<compile_context>
chip_gen: v7x
topology: tpu7x:2x2x1
jax: 0.10.0
libtpu: 0.0.40
codegen_flags: <defaults>
</compile_context>

<pallas_src>
import jax
import jax.numpy as jnp
from jax.experimental import pallas as pl
from jax.experimental.pallas import tpu as pltpu


def _round_up(v, m):
    return (v + m - 1) // m * m


def _mlp_embedder_kernel(x_ref, w_in_ref, b_in_ref, w_out_ref, b_out_ref,
                         o_ref, h_ref):
    """Grid step (c, i, j): c = column-range split (core shard), i = batch
    tile, j = out_layer column tile within this split's range."""
    # First matmul + bias + SiLU once per (c, i); the result stays resident in
    # VMEM scratch (already in the second-matmul dtype) for every j tile.
    @pl.when(pl.program_id(2) == 0)
    def _():
        h = jnp.dot(x_ref[...], w_in_ref[...],
                    preferred_element_type=jnp.float32)
        h = h + b_in_ref[...].astype(jnp.float32)          # broadcast [1, H]
        h_ref[...] = (h * jax.nn.sigmoid(h)).astype(h_ref.dtype)  # SiLU (EUP)

    # Second matmul against the streamed column tile of w_out (MXU, f32 acc).
    out = jnp.dot(h_ref[...], w_out_ref[...],
                  preferred_element_type=jnp.float32)
    o_ref[...] = (out + b_out_ref[...].astype(jnp.float32)).astype(o_ref.dtype)


def mlp_embedder(x, w_in, b_in, w_out, b_out, *, tm=1024, tn=512, n_split=2):
    """Fused MLPEmbedder forward.

    x: [B, in_dim]; w_in: [in_dim, H]; b_in: [H]; w_out: [H, H]; b_out: [H].
    """
    B, in_dim = x.shape
    H = w_in.shape[1]
    out_dtype = x.dtype
    w_dtype = w_out.dtype

    # ---- lane/sublane-aligned sizes ----------------------------------------
    Hp = _round_up(H, 128)                    # lane-aligned hidden dim

    tn = min(tn, Hp)
    tn = max(128, tn - tn % 128)
    while Hp % tn != 0:                       # tn stays a 128-multiple divisor
        tn -= 128

    tm = _round_up(min(tm, _round_up(B, 8)), 8)   # whole batch in one M tile
                                                  # whenever the budget allows

    # ---- generation-aware VMEM budget; shrink tiles to fit ------------------
    x_sz = jnp.dtype(x.dtype).itemsize
    w_sz = jnp.dtype(w_dtype).itemsize
    o_sz = jnp.dtype(out_dtype).itemsize

    def vmem_bytes(tm_, tn_):
        return int(
            2 * (in_dim * Hp + 8 * Hp) * w_sz     # w_in + b_in (<=2 buffers)
            + 2 * (tm_ * in_dim) * x_sz           # x tiles (double-buffered)
            + 2 * (Hp * tn_ + 8 * tn_) * w_sz     # w_out + b_out tiles
            + 2 * (tm_ * tn_) * o_sz              # output tiles
            + tm_ * Hp * w_sz)                    # resident h scratch

    try:
        phys_vmem = int(pltpu.get_tpu_info().vmem_capacity_bytes)
    except Exception:
        phys_vmem = 64 << 20                      # v7x per-TC (smallest case)
    budget = int(phys_vmem * 0.70)                # leave Mosaic scratch headroom

    def shrink_tn(t):
        t2 = t - 128
        while t2 >= 128 and Hp % t2 != 0:
            t2 -= 128
        return t2 if t2 >= 128 else t

    while vmem_bytes(tm, tn) > budget:
        if tn > 256 and shrink_tn(tn) < tn:
            tn = shrink_tn(tn)
        elif tm > 8:
            tm = max(8, _round_up(tm // 2, 8))
        elif tn > 128 and shrink_tn(tn) < tn:
            tn = shrink_tn(tn)
        else:
            break

    Bp = _round_up(B, tm)

    # Column-range split across TensorCores (v7x megacore).  Each core computes
    # its own h (the j==0 guard is per (c, i)), so the split is always safe.
    if n_split < 1 or (Hp // tn) % max(n_split, 1) != 0:
        n_split = 1
    nj = (Hp // tn) // n_split

    # ---- zero-pad to tile boundaries (mathematically inert) -----------------
    if Bp != B:
        x = jnp.pad(x, ((0, Bp - B), (0, 0)))
    if Hp != H:
        w_in = jnp.pad(w_in, ((0, 0), (0, Hp - H)))
        b_in = jnp.pad(b_in, ((0, Hp - H),))
        w_out = jnp.pad(w_out, ((0, Hp - H), (0, Hp - H)))
        b_out = jnp.pad(b_out, ((0, Hp - H),))
    b_in2 = b_in.reshape(1, Hp)
    b_out2 = b_out.reshape(1, Hp)

    grid = (n_split, Bp // tm, nj)

    # ---- advisory cost estimate for XLA's scheduler -------------------------
    cost = pl.CostEstimate(
        flops=2 * Bp * (in_dim * Hp * n_split + Hp * Hp),
        transcendentals=Bp * Hp * n_split,
        bytes_accessed=int(Bp * in_dim * x_sz
                           + in_dim * Hp * w_sz + 2 * Hp * w_sz
                           + (Bp // tm) * Hp * Hp * w_sz   # w_out per M tile
                           + Bp * Hp * o_sz),
    )

    vmem_limit = int(min(max(int(vmem_bytes(tm, tn) * 1.3), 32 << 20),
                         int(phys_vmem * 0.8)))

    def build(single_buffer_consts):
        # Constant-index inputs need no double buffer; frees in_dim*Hp bytes.
        const_kw = ({"pipeline_mode": pl.Buffered(1)}
                    if single_buffer_consts else {})
        return pl.pallas_call(
            _mlp_embedder_kernel,
            out_shape=jax.ShapeDtypeStruct((Bp, Hp), out_dtype),
            grid_spec=pltpu.PrefetchScalarGridSpec(
                num_scalar_prefetch=0,
                grid=grid,
                in_specs=[
                    pl.BlockSpec((tm, in_dim), lambda c, i, j: (i, 0)),   # x
                    pl.BlockSpec((in_dim, Hp), lambda c, i, j: (0, 0),
                                 **const_kw),                             # w_in
                    pl.BlockSpec((1, Hp), lambda c, i, j: (0, 0),
                                 **const_kw),                             # b_in
                    pl.BlockSpec((Hp, tn),
                                 lambda c, i, j: (0, c * nj + j)),        # w_out
                    pl.BlockSpec((1, tn),
                                 lambda c, i, j: (0, c * nj + j)),        # b_out
                ],
                out_specs=pl.BlockSpec((tm, tn),
                                       lambda c, i, j: (i, c * nj + j)),
                scratch_shapes=[pltpu.VMEM((tm, Hp), w_dtype)],  # resident h
            ),
            compiler_params=pltpu.CompilerParams(
                dimension_semantics=("parallel", "parallel", "arbitrary"),
                vmem_limit_bytes=vmem_limit,
            ),
            cost_estimate=cost,
        )

    try:
        out = build(True)(x, w_in, b_in2, w_out, b_out2)
    except Exception:
        # pipeline_mode=pl.Buffered(1) unsupported on this jax build; fall
        # back to the default double-buffered constants (same semantics).
        out = build(False)(x, w_in, b_in2, w_out, b_out2)

    if Bp != B or Hp != H:
        out = out[:B, :H]
    return out


def mlp_embedder_ref(x, w_in, b_in, w_out, b_out):
    h = x @ w_in + b_in
    h = h * jax.nn.sigmoid(h)
    return h @ w_out + b_out


if __name__ == "__main__":
    # Small shapes consistent with MLPEmbedder(in_dim, hidden_dim).  B=13 and
    # hidden=192 exercise both padding paths; the three configs below exercise
    # (a) the single-tile fast path, (b) the 2-way core split with M tiling,
    # and (c) resident-h reuse across multiple j tiles on one core.
    B, in_dim, hidden_dim = 13, 32, 192
    key = jax.random.PRNGKey(0)
    kx, kwi, kbi, kwo, kbo = jax.random.split(key, 5)

    x = jax.random.normal(kx, (B, in_dim), dtype=jnp.float32)
    # Deterministic synthetic parameter init (not a checkpoint load).
    w_in = jax.random.normal(kwi, (in_dim, hidden_dim), dtype=jnp.float32) * 0.05
    b_in = jax.random.normal(kbi, (hidden_dim,), dtype=jnp.float32) * 0.05
    w_out = jax.random.normal(kwo, (hidden_dim, hidden_dim), dtype=jnp.float32) * 0.05
    b_out = jax.random.normal(kbo, (hidden_dim,), dtype=jnp.float32) * 0.05

    ref = mlp_embedder_ref(x, w_in, b_in, w_out, b_out)

    configs = [
        dict(),                              # defaults: grid (1, 1, 1)
        dict(tm=8, tn=128, n_split=2),       # grid (2, 2, 1): core split + M tiles
        dict(tm=8, tn=128, n_split=1),       # grid (1, 2, 2): h reused across j
    ]
    for cfg in configs:
        out = mlp_embedder(x, w_in, b_in, w_out, b_out, **cfg)
        out = jax.block_until_ready(out)
        assert out.shape == (B, hidden_dim)
        assert jnp.allclose(out, ref, atol=1e-4, rtol=1e-4), f"mismatch {cfg}"

    # bf16 production path smoke test (loose tolerance vs f32 reference).
    out_bf = mlp_embedder(x.astype(jnp.bfloat16), w_in.astype(jnp.bfloat16),
                          b_in.astype(jnp.bfloat16), w_out.astype(jnp.bfloat16),
                          b_out.astype(jnp.bfloat16))
    out_bf = jax.block_until_ready(out_bf)
    assert out_bf.shape == (B, hidden_dim)
    assert jnp.allclose(out_bf.astype(jnp.float32), ref, atol=1e-1, rtol=1e-1)

    print("KERNEL_OK")
</pallas_src>

<mosaic_0001>
module attributes {stable_mosaic.version = 11 : i64} {
  func.func @_mlp_embedder_kernel(%arg0: i32, %arg1: i32, %arg2: i32, %arg3: memref<16x32xf32, #tpu.memory_space<vmem>>, %arg4: memref<32x256xf32, #tpu.memory_space<vmem>>, %arg5: memref<1x256xf32, #tpu.memory_space<vmem>>, %arg6: memref<256x256xf32, #tpu.memory_space<vmem>>, %arg7: memref<1x256xf32, #tpu.memory_space<vmem>>, %arg8: memref<16x256xf32, #tpu.memory_space<vmem>>, %arg9: memref<16x256xf32, #tpu.memory_space<vmem>>) attributes {dimension_semantics = [#tpu.dimension_semantics<parallel>, #tpu.dimension_semantics<parallel>, #tpu.dimension_semantics<arbitrary>], iteration_bounds = array<i64: 1, 1, 1>, scalar_prefetch = 0 : i64, scratch_operands = 1 : i64, tpu.core_type = #tpu.core_type<tc>, window_params = [{transform_indices = @transform_0, window_bounds = array<i64: 16, 32>}, {pipeline_mode = #tpu.pipeline_mode<synchronous>, transform_indices = @transform_1, window_bounds = array<i64: 32, 256>}, {pipeline_mode = #tpu.pipeline_mode<synchronous>, transform_indices = @transform_2, window_bounds = array<i64: 1, 256>}, {transform_indices = @transform_3, window_bounds = array<i64: 256, 256>}, {transform_indices = @transform_4, window_bounds = array<i64: 1, 256>}, {transform_indices = @transform_5, window_bounds = array<i64: 16, 256>}]} {
    %c0_i32 = arith.constant 0 : i32
    %0 = arith.cmpi eq, %arg2, %c0_i32 : i32
    %1 = arith.extui %0 : i1 to i32
    %c0_i32_0 = arith.constant 0 : i32
    %2 = arith.cmpi ne, %1, %c0_i32_0 : i32
    scf.if %2 {
      %c0_8 = arith.constant 0 : index
      %c0_9 = arith.constant 0 : index
      %10 = vector.load %arg3[%c0_8, %c0_9] : memref<16x32xf32, #tpu.memory_space<vmem>>, vector<16x32xf32>
      %c0_10 = arith.constant 0 : index
      %c0_11 = arith.constant 0 : index
      %11 = vector.load %arg4[%c0_10, %c0_11] : memref<32x256xf32, #tpu.memory_space<vmem>>, vector<32x256xf32>
      %cst_12 = arith.constant dense<0.000000e+00> : vector<16x256xf32>
      %12 = tpu.matmul %10, %11, %cst_12 {dimension_numbers = #tpu.dot_dimension_numbers<[1], [0], [0], [1], [0, 0, 1, 1], [], []>} : vector<16x32xf32>, vector<32x256xf32>, vector<16x256xf32> -> vector<16x256xf32>
      %c0_13 = arith.constant 0 : index
      %c0_14 = arith.constant 0 : index
      %13 = vector.load %arg5[%c0_13, %c0_14] : memref<1x256xf32, #tpu.memory_space<vmem>>, vector<1x256xf32>
      %14 = vector.broadcast %13 : vector<1x256xf32> to vector<16x256xf32>
      %15 = arith.addf %12, %14 : vector<16x256xf32>
      %16 = arith.negf %15 : vector<16x256xf32>
      %17 = math.exp %16 : vector<16x256xf32>
      %cst_15 = arith.constant 1.000000e+00 : f32
      %18 = vector.broadcast %cst_15 : f32 to vector<16x256xf32>
      %19 = arith.addf %18, %17 : vector<16x256xf32>
      %20 = arith.divf %18, %19 : vector<16x256xf32>
      %21 = arith.mulf %15, %20 : vector<16x256xf32>
      %c0_16 = arith.constant 0 : index
      %c0_17 = arith.constant 0 : index
      %22 = vector.load %arg9[%c0_16, %c0_17] : memref<16x256xf32, #tpu.memory_space<vmem>>, vector<16x256xf32>
      tpu.vector_store %arg9[%c0_16, %c0_17], %21 {strides = array<i32>} : memref<16x256xf32, #tpu.memory_space<vmem>>, vector<16x256xf32>,
    } else {
    }
    %c0 = arith.constant 0 : index
    %c0_1 = arith.constant 0 : index
    %3 = vector.load %arg9[%c0, %c0_1] : memref<16x256xf32, #tpu.memory_space<vmem>>, vector<16x256xf32>
    %c0_2 = arith.constant 0 : index
    %c0_3 = arith.constant 0 : index
    %4 = vector.load %arg6[%c0_2, %c0_3] : memref<256x256xf32, #tpu.memory_space<vmem>>, vector<256x256xf32>
    %cst = arith.constant dense<0.000000e+00> : vector<16x256xf32>
    %5 = tpu.matmul %3, %4, %cst {dimension_numbers = #tpu.dot_dimension_numbers<[1], [0], [0], [1], [0, 0, 1, 1], [], []>} : vector<16x256xf32>, vector<256x256xf32>, vector<16x256xf32> -> vector<16x256xf32>
    %c0_4 = arith.constant 0 : index
    %c0_5 = arith.constant 0 : index
    %6 = vector.load %arg7[%c0_4, %c0_5] : memref<1x256xf32, #tpu.memory_space<vmem>>, vector<1x256xf32>
    %7 = vector.broadcast %6 : vector<1x256xf32> to vector<16x256xf32>
    %8 = arith.addf %5, %7 : vector<16x256xf32>
    %c0_6 = arith.constant 0 : index
    %c0_7 = arith.constant 0 : index
    %9 = vector.load %arg8[%c0_6, %c0_7] : memref<16x256xf32, #tpu.memory_space<vmem>>, vector<16x256xf32>
    tpu.vector_store %arg8[%c0_6, %c0_7], %8 {strides = array<i32>} : memref<16x256xf32, #tpu.memory_space<vmem>>, vector<16x256xf32>,
    return
  }
  func.func @transform_0(%arg0: i32, %arg1: i32, %arg2: i32) -> (i32, i32) {
    %c0_i32 = arith.constant 0 : i32
    %c0_i32_0 = arith.constant 0 : i32
    return %arg1, %c0_i32 : i32, i32
  }
  func.func @transform_1(%arg0: i32, %arg1: i32, %arg2: i32) -> (i32, i32) {
    %c0_i32 = arith.constant 0 : i32
    %c0_i32_0 = arith.constant 0 : i32
    %c0_i32_1 = arith.constant 0 : i32
    return %c0_i32, %c0_i32_0 : i32, i32
  }
  func.func @transform_2(%arg0: i32, %arg1: i32, %arg2: i32) -> (i32, i32) {
    %c0_i32 = arith.constant 0 : i32
    %c0_i32_0 = arith.constant 0 : i32
    %c0_i32_1 = arith.constant 0 : i32
    return %c0_i32, %c0_i32_0 : i32, i32
  }
  func.func @transform_3(%arg0: i32, %arg1: i32, %arg2: i32) -> (i32, i32) {
    %c1_i32 = arith.constant 1 : i32
    %0 = arith.muli %arg0, %c1_i32 : i32
    %1 = arith.addi %0, %arg2 : i32
    %c0_i32 = arith.constant 0 : i32
    %c0_i32_0 = arith.constant 0 : i32
    return %c0_i32, %1 : i32, i32
  }
  func.func @transform_4(%arg0: i32, %arg1: i32, %arg2: i32) -> (i32, i32) {
    %c1_i32 = arith.constant 1 : i32
    %0 = arith.muli %arg0, %c1_i32 : i32
    %1 = arith.addi %0, %arg2 : i32
    %c0_i32 = arith.constant 0 : i32
    %c0_i32_0 = arith.constant 0 : i32
    return %c0_i32, %1 : i32, i32
  }
  func.func @transform_5(%arg0: i32, %arg1: i32, %arg2: i32) -> (i32, i32) {
    %c1_i32 = arith.constant 1 : i32
    %0 = arith.muli %arg0, %c1_i32 : i32
    %1 = arith.addi %0, %arg2 : i32
    %c0_i32 = arith.constant 0 : i32
    return %arg1, %1 : i32, i32
  }
}

module attributes {stable_mosaic.version = 11 : i64} {
  func.func @_mlp_embedder_kernel(%arg0: i32, %arg1: i32, %arg2: i32, %arg3: memref<16x32xf32, #tpu.memory_space<vmem>>, %arg4: memref<32x256xf32, #tpu.memory_space<vmem>>, %arg5: memref<1x256xf32, #tpu.memory_space<vmem>>, %arg6: memref<256x256xf32, #tpu.memory_space<vmem>>, %arg7: memref<1x256xf32, #tpu.memory_space<vmem>>, %arg8: memref<16x256xf32, #tpu.memory_space<vmem>>, %arg9: memref<16x256xf32, #tpu.memory_space<vmem>>) attributes {dimension_semantics = [#tpu.dimension_semantics<parallel>, #tpu.dimension_semantics<parallel>, #tpu.dimension_semantics<arbitrary>], iteration_bounds = array<i64: 1, 1, 1>, scalar_prefetch = 0 : i64, scratch_operands = 1 : i64, tpu.core_type = #tpu.core_type<tc>, window_params = [{transform_indices = @transform_0, window_bounds = array<i64: 16, 32>}, {pipeline_mode = #tpu.pipeline_mode<synchronous>, transform_indices = @transform_1, window_bounds = array<i64: 32, 256>}, {pipeline_mode = #tpu.pipeline_mode<synchronous>, transform_indices = @transform_2, window_bounds = array<i64: 1, 256>}, {transform_indices = @transform_3, window_bounds = array<i64: 256, 256>}, {transform_indices = @transform_4, window_bounds = array<i64: 1, 256>}, {transform_indices = @transform_5, window_bounds = array<i64: 16, 256>}]} {
    %c0_i32 = arith.constant 0 : i32
    %0 = arith.cmpi eq, %arg2, %c0_i32 : i32
    %1 = arith.extui %0 : i1 to i32
    %c0_i32_0 = arith.constant 0 : i32
    %2 = arith.cmpi ne, %1, %c0_i32_0 : i32
    scf.if %2 {
      %c0_8 = arith.constant 0 : index
      %c0_9 = arith.constant 0 : index
      %10 = vector.load %arg3[%c0_8, %c0_9] : memref<16x32xf32, #tpu.memory_space<vmem>>, vector<16x32xf32>
      %c0_10 = arith.constant 0 : index
      %c0_11 = arith.constant 0 : index
      %11 = vector.load %arg4[%c0_10, %c0_11] : memref<32x256xf32, #tpu.memory_space<vmem>>, vector<32x256xf32>
      %cst_12 = arith.constant dense<0.000000e+00> : vector<16x256xf32>
      %12 = tpu.matmul %10, %11, %cst_12 {dimension_numbers = #tpu.dot_dimension_numbers<[1], [0], [0], [1], [0, 0, 1, 1], [], []>} : vector<16x32xf32>, vector<32x256xf32>, vector<16x256xf32> -> vector<16x256xf32>
      %c0_13 = arith.constant 0 : index
      %c0_14 = arith.constant 0 : index
      %13 = vector.load %arg5[%c0_13, %c0_14] : memref<1x256xf32, #tpu.memory_space<vmem>>, vector<1x256xf32>
      %14 = vector.broadcast %13 : vector<1x256xf32> to vector<16x256xf32>
      %15 = arith.addf %12, %14 : vector<16x256xf32>
      %16 = arith.negf %15 : vector<16x256xf32>
      %17 = math.exp %16 : vector<16x256xf32>
      %cst_15 = arith.constant 1.000000e+00 : f32
      %18 = vector.broadcast %cst_15 : f32 to vector<16x256xf32>
      %19 = arith.addf %18, %17 : vector<16x256xf32>
      %20 = arith.divf %18, %19 : vector<16x256xf32>
      %21 = arith.mulf %15, %20 : vector<16x256xf32>
      %c0_16 = arith.constant 0 : index
      %c0_17 = arith.constant 0 : index
      %22 = vector.load %arg9[%c0_16, %c0_17] : memref<16x256xf32, #tpu.memory_space<vmem>>, vector<16x256xf32>
      tpu.vector_store %arg9[%c0_16, %c0_17], %21 {strides = array<i32>} : memref<16x256xf32, #tpu.memory_space<vmem>>, vector<16x256xf32>,
    } else {
    }
    %c0 = arith.constant 0 : index
    %c0_1 = arith.constant 0 : index
    %3 = vector.load %arg9[%c0, %c0_1] : memref<16x256xf32, #tpu.memory_space<vmem>>, vector<16x256xf32>
    %c0_2 = arith.constant 0 : index
    %c0_3 = arith.constant 0 : index
    %4 = vector.load %arg6[%c0_2, %c0_3] : memref<256x256xf32, #tpu.memory_space<vmem>>, vector<256x256xf32>
    %cst = arith.constant dense<0.000000e+00> : vector<16x256xf32>
    %5 = tpu.matmul %3, %4, %cst {dimension_numbers = #tpu.dot_dimension_numbers<[1], [0], [0], [1], [0, 0, 1, 1], [], []>} : vector<16x256xf32>, vector<256x256xf32>, vector<16x256xf32> -> vector<16x256xf32>
    %c0_4 = arith.constant 0 : index
    %c0_5 = arith.constant 0 : index
    %6 = vector.load %arg7[%c0_4, %c0_5] : memref<1x256xf32, #tpu.memory_space<vmem>>, vector<1x256xf32>
    %7 = vector.broadcast %6 : vector<1x256xf32> to vector<16x256xf32>
    %8 = arith.addf %5, %7 : vector<16x256xf32>
    %c0_6 = arith.constant 0 : index
    %c0_7 = arith.constant 0 : index
    %9 = vector.load %arg8[%c0_6, %c0_7] : memref<16x256xf32, #tpu.memory_space<vmem>>, vector<16x256xf32>
    tpu.vector_store %arg8[%c0_6, %c0_7], %8 {strides = array<i32>} : memref<16x256xf32, #tpu.memory_space<vmem>>, vector<16x256xf32>,
    return
  }
  func.func @transform_0(%arg0: i32, %arg1: i32, %arg2: i32) -> (i32, i32) {
    %c0_i32 = arith.constant 0 : i32
    %c0_i32_0 = arith.constant 0 : i32
    return %arg1, %c0_i32 : i32, i32
  }
  func.func @transform_1(%arg0: i32, %arg1: i32, %arg2: i32) -> (i32, i32) {
    %c0_i32 = arith.constant 0 : i32
    %c0_i32_0 = arith.constant 0 : i32
    %c0_i32_1 = arith.constant 0 : i32
    return %c0_i32, %c0_i32_0 : i32, i32
  }
  func.func @transform_2(%arg0: i32, %arg1: i32, %arg2: i32) -> (i32, i32) {
    %c0_i32 = arith.constant 0 : i32
    %c0_i32_0 = arith.constant 0 : i32
    %c0_i32_1 = arith.constant 0 : i32
    return %c0_i32, %c0_i32_0 : i32, i32
  }
  func.func @transform_3(%arg0: i32, %arg1: i32, %arg2: i32) -> (i32, i32) {
    %c1_i32 = arith.constant 1 : i32
    %0 = arith.muli %arg0, %c1_i32 : i32
    %1 = arith.addi %0, %arg2 : i32
    %c0_i32 = arith.constant 0 : i32
    %c0_i32_0 = arith.constant 0 : i32
    return %c0_i32, %1 : i32, i32
  }
  func.func @transform_4(%arg0: i32, %arg1: i32, %arg2: i32) -> (i32, i32) {
    %c1_i32 = arith.constant 1 : i32
    %0 = arith.muli %arg0, %c1_i32 : i32
    %1 = arith.addi %0, %arg2 : i32
    %c0_i32 = arith.constant 0 : i32
    %c0_i32_0 = arith.constant 0 : i32
    return %c0_i32, %1 : i32, i32
  }
  func.func @transform_5(%arg0: i32, %arg1: i32, %arg2: i32) -> (i32, i32) {
    %c1_i32 = arith.constant 1 : i32
    %0 = arith.muli %arg0, %c1_i32 : i32
    %1 = arith.addi %0, %arg2 : i32
    %c0_i32 = arith.constant 0 : i32
    return %arg1, %1 : i32, i32
  }
}

</mosaic_0001>

<llo_original>
// kernel: tpu_custom_call.1
$region0: #{tpu_custom_call.1}
  #allocation0 [shape = 'u32[]', space=smem, size = 0x4, offset = 0x4, fixed_abs, tag = 'smem constant byte address 0x4 - core index']
  #allocation1 [shape = 'u32[144,128]{1,0:T(1,128)}', space=vmem, size = 0x12000, scoped, tag = 'internal scratch']
  #allocation2 [shape = 'f32[16,256]{1,0:T(8,128)}', space=vmem, size = 0x4000, scoped, tag = 'scratch operand']
  %s0 = inlined_call_operand.hbm [shape: f32[16,32], index: 0, kind: input, shape index: {}]
  %s1 = inlined_call_operand.hbm [shape: f32[32,256], index: 1, kind: input, shape index: {}]
  %s2 = inlined_call_operand.vmem [shape: f32[1,256], index: 2, kind: input, shape index: {}]
  %s3 = inlined_call_operand.hbm [shape: f32[256,256], index: 3, kind: input, shape index: {}]
  %s4 = inlined_call_operand.vmem [shape: f32[1,256], index: 4, kind: input, shape index: {}]
  %s5 = inlined_call_operand.hbm [shape: f32[16,256], index: 5, kind: output, shape index: {}]
  %s6 = sld [smem:[#allocation0]]
  $region46: #{tpu_custom_call.1} parent=0
    _
  %s8 = ssub.s32 1, %s6
  %s9 = scalar_select 0, %s8, %s6
  $region1: #{tpu_custom_call.1} parent=0
    #allocation3 [shape = 'u8[8192]{0}', space=vmem, size = 0x2000, scoped, tag = 'input window, operand 0, single buffered']
    #allocation4 [shape = 's32[1]{0}', space=sflag, size = 0x4, scoped, tag = 'scoped memory for tpu_custom_call.1']
    #allocation5 [shape = 's32[1]{0}', space=sflag, size = 0x4, scoped, tag = 'scoped memory for tpu_custom_call.1']
    #allocation6 [shape = 'u8[32768]{0}', space=vmem, size = 0x8000, scoped, tag = 'input window, operand 1, single buffered']
    #allocation7 [shape = 's32[1]{0}', space=sflag, size = 0x4, scoped, tag = 'scoped memory for tpu_custom_call.1']
    #allocation8 [shape = 'u8[262144]{0}', space=vmem, size = 0x40000, scoped, tag = 'input window, operand 3, single buffered']
    #allocation9 [shape = 'u8[16384]{0}', space=vmem, size = 0x4000, scoped, tag = 'output window, operand 0, single buffered']
    %10 = vsyncpa [#allocation4], 0
    %11 = vsyncpa [#allocation7], 0
    %12 = vsyncpa [#allocation5], 0
    // Predicated region
    $region2: #{tpu_custom_call.1} parent=1 // pred_check
      _
    $region3: #{tpu_custom_call.1} parent=1 // pred_check_branch
      %14 = sbr.rel (0) target = $region5
    $region4: #{tpu_custom_call.1} parent=1 // pred_region
      %s16 = ssub.s32 256, 256
      %17 = vsyncadd [#allocation4], %s16
      %s18 = sshll.u32 [#allocation3], 4
      %s19 = int_to_ptr.vmem [resolvable:$true] %s18
      %24 = dma.hbm_to_vmem [thread:$0]  %s0, 256, %s19, [#allocation4], 128, 128, 8
    $region5: #{tpu_custom_call.1} parent=1 // pred_fallthru
      _
    // Predicated region
    $region6: #{tpu_custom_call.1} parent=1 // pred_check
      _
    $region7: #{tpu_custom_call.1} parent=1 // pred_check_branch
      %26 = sbr.rel (0) target = $region9
    $region8: #{tpu_custom_call.1} parent=1 // pred_region
      %s28 = ssub.s32 1024, 1024
      %29 = vsyncadd [#allocation7], %s28
      %s30 = sshll.u32 [#allocation6], 4
      %s31 = int_to_ptr.vmem [resolvable:$true] %s30
      %36 = dma.hbm_to_vmem [thread:$0]  %s1, 1024, %s31, [#allocation7], 256, 256, 16
    $region9: #{tpu_custom_call.1} parent=1 // pred_fallthru
      _
    // Predicated region
    $region10: #{tpu_custom_call.1} parent=1 // pred_check
      _
    $region11: #{tpu_custom_call.1} parent=1 // pred_check_branch
      %38 = sbr.rel (0) target = $region13
    $region12: #{tpu_custom_call.1} parent=1 // pred_region
      _
    $region13: #{tpu_custom_call.1} parent=1 // pred_fallthru
      _
    // Predicated region
    $region14: #{tpu_custom_call.1} parent=1 // pred_check
      _
    $region15: #{tpu_custom_call.1} parent=1 // pred_check_branch
      %40 = sbr.rel (0) target = $region17
    $region16: #{tpu_custom_call.1} parent=1 // pred_region
      %s41 = sadd.s32 0, 0
      %s42 = smul.u32 2, %s41
      %s44 = ssub.s32 8192, 8192
      %45 = vsyncadd [#allocation7], %s44
      %s46 = smul.addr %s42, 128
      %s47 = scalar_lea.hbm %s3, %s46
      %s48 = sshll.u32 [#allocation8], 4
      %s49 = int_to_ptr.vmem [resolvable:$true] %s48
      %54 = dma.hbm_to_vmem [thread:$0]  %s47, 8192, %s49, [#allocation7], 256, 256, 16
    $region17: #{tpu_custom_call.1} parent=1 // pred_fallthru
      _
    // Predicated region
    $region18: #{tpu_custom_call.1} parent=1 // pred_check
      _
    $region19: #{tpu_custom_call.1} parent=1 // pred_check_branch
      %56 = sbr.rel (0) target = $region21
    $region20: #{tpu_custom_call.1} parent=1 // pred_region
      %s57 = sadd.s32 0, 0
      %s58 = smul.u32 2, %s57
      %p59 = scmp.lt.s32.totalorder %s58, 1
      %s60 = scalar_select %p59, %s58, 1
      %s61 = scalar_lea.vmem %s4, %s60
      %s62 = sadd.s32 0, 0
      %s63 = smul.u32 2, %s62
    $region21: #{tpu_custom_call.1} parent=1 // pred_fallthru
      _
    // Predicated region
    $region22: #{tpu_custom_call.1} parent=1 // pred_check
      _
    $region23: #{tpu_custom_call.1} parent=1 // pred_check_branch
      %65 = sbr.rel (0) target = $region25
    $region24: #{tpu_custom_call.1} parent=1 // pred_region
      %66 = dma.done [#allocation4], 256
    $region25: #{tpu_custom_call.1} parent=1 // pred_fallthru
      _
    // Predicated region
    $region26: #{tpu_custom_call.1} parent=1 // pred_check
      _
    $region27: #{tpu_custom_call.1} parent=1 // pred_check_branch
      %68 = sbr.rel (0) target = $region29
    $region28: #{tpu_custom_call.1} parent=1 // pred_region
      %69 = dma.done [#allocation7], 1024
    $region29: #{tpu_custom_call.1} parent=1 // pred_fallthru
      _
    // Predicated region
    $region30: #{tpu_custom_call.1} parent=1 // pred_check
      _
    $region31: #{tpu_custom_call.1} parent=1 // pred_check_branch
      %71 = sbr.rel (0) target = $region33
    $region32: #{tpu_custom_call.1} parent=1 // pred_region
      %72 = dma.done [#allocation7], 8192
    $region33: #{tpu_custom_call.1} parent=1 // pred_fallthru
      _
    %s73 = sadd.s32 0, 0
    %s74 = smul.u32 2, %s73
    %p75 = scmp.lt.s32.totalorder %s74, 1
    %s76 = scalar_select %p75, %s74, 1
    %s77 = scalar_lea.vmem %s4, %s76
    %s78 = sadd.s32 0, 0
    %s79 = smul.u32 2, %s78
    %s80 = sadd.s32 0, 0
    %s81 = smul.u32 2, %s80
    %p82 = scmp.lt.s32.totalorder %s81, 1
    %s83 = scalar_select %p82, %s81, 1
    %s84 = scalar_lea.vmem %s4, %s83
    %s85 = sadd.s32 0, 0
    %s86 = smul.u32 2, %s85
    %s87 = sadd.s32 0, 0
    %s88 = smul.u32 2, %s87
    %p89 = scmp.eq.s32.totalorder 0, 0
    // Predicated region
    $region34: #{tpu_custom_call.1} parent=1 // pred_check
      %p90 = pneg %p89
    $region35: #{tpu_custom_call.1} parent=1 // pred_check_branch
      %92 = sbr.rel (%p90) target = $region37
    $region36: #{tpu_custom_call.1} parent=1 // pred_region
      %v93 = vld [vmem:[#allocation3] sm:$0xff]
      %v94 = vld [vmem:[#allocation3 + $0x8] sm:$0xff]
      %v95 = vld [vmem:[#allocation6] sm:$0xff]
      %v96 = vld [vmem:[#allocation6 + $0x8] sm:$0xff]
      %v97 = vld [vmem:[#allocation6 + $0x10] sm:$0xff]
      %v98 = vld [vmem:[#allocation6 + $0x18] sm:$0xff]
      %v99 = vld [vmem:[#allocation6 + $0x20] sm:$0xff]
      %v100 = vld [vmem:[#allocation6 + $0x28] sm:$0xff]
      %v101 = vld [vmem:[#allocation6 + $0x30] sm:$0xff]
      %v102 = vld [vmem:[#allocation6 + $0x38] sm:$0xff]
      %v103 = vld [vmem:[%s2] sm:$0x3]
      %v105 = vlaneseq
      %v106 = vshrl.u32 %v105, 7
      %v107 = vsub.s32 0, %v106
      %v108 = vrot.slane %v103, %v107
      %v109 = vlaneseq
      %v110 = vshrl.u32 %v109, 7
      %v111 = vsub.s32 1, %v110
      %v112 = vrot.slane %v103, %v111
      %vm115 = vcmask 261120
      %v117 = vsel %vm115, %v93, 0
      %v120 = vsel %vm115, %v94, 0
      %122 = vmatprep.subr.mxu0 %v96
      %123 = vmatpush1.msra.mxu0 %v95
      %124 = vmatprep.subr.mxu0 %v98
      %125 = vmatpush1.msra.mxu0 %v97
      %126 = vmatprep.subr.mxu0 %v100
      %127 = vmatpush1.msra.mxu0 %v99
      %128 = vmatprep.subr.mxu0 %v102
      %129 = vmatpush1.msra.mxu0 %v101
      %130 = vmatprep.subr.mxu0 0.0
      %131 = vmatpush1.msra.mxu0 0.0
      %132 = vmatprep.subr.mxu0 0.0
      %133 = vmatpush1.msra.mxu0 0.0
      %134 = vmatprep.subr.mxu0 0.0
      %135 = vmatpush1.msra.mxu0 0.0
      %136 = vmatprep.subr.mxu0 0.0
      %137 = vmatpush1.msra.mxu0 0.0
      %138 = vmatprep.subr.mxu0 0.0
      %139 = vmatpush1.msra.mxu0 0.0
      %140 = vmatprep.subr.mxu0 0.0
      %141 = vmatpush1.msra.mxu0 0.0
      %142 = vmatprep.subr.mxu0 0.0
      %143 = vmatpush1.msra.mxu0 0.0
      %144 = vmatprep.subr.mxu0 0.0
      %145 = vmatpush1.msra.mxu0 0.0
      %146 = vmatprep.subr.mxu0 0.0
      %147 = vmatpush1.msra.mxu0 0.0
      %148 = vmatprep.subr.mxu0 0.0
      %149 = vmatpush1.msra.mxu0 0.0
      %150 = vmatprep.subr.mxu0 0.0
      %151 = vmatpush1.msra.mxu0 0.0
      %152 = vmatprep.subr.mxu0 0.0
      %153 = vmatpush1.msra.mxu0 0.0
      %154 = vmatprep.subr.mxu0 0.0
      %155 = vmatpush1.msra.mxu0 0.0
      %156 = vmatprep.subr.mxu0 0.0
      %157 = vmatpush1.msra.mxu0 0.0
      %158 = vmatprep.subr.mxu0 0.0
      %159 = vmatpush1.msra.mxu0 0.0
      %160 = vmatprep.subr.mxu0 0.0
      %161 = vmatpush1.msra.mxu0 0.0
      %162 = vmatprep.subr.mxu0 0.0
      %163 = vmatpush1.msra.mxu0 0.0
      %164 = vmatprep.subr.mxu0 0.0
      %165 = vmatpush1.msra.mxu0 0.0
      %166 = vmatprep.subr.mxu0 0.0
      %167 = vmatpush1.msra.mxu0 0.0
      %168 = vmatprep.subr.mxu0 0.0
      %169 = vmatpush1.msra.mxu0 0.0
      %170 = vmatprep.subr.mxu0 0.0
      %171 = vmatpush1.msra.mxu0 0.0
      %172 = vmatprep.subr.mxu0 0.0
      %173 = vmatpush1.msra.mxu0 0.0
      %174 = vmatprep.subr.mxu0 0.0
      %175 = vmatpush1.msra.mxu0 0.0
      %176 = vmatprep.subr.mxu0 0.0
      %177 = vmatpush1.msra.mxu0 0.0
      %178 = vmatprep.subr.mxu0 0.0
      %179 = vmatpush1.msra.mxu0 0.0
      %180 = vmatprep.subr.mxu0 0.0
      %181 = vmatpush1.msra.mxu0 0.0
      %182 = vmatprep.subr.mxu0 0.0
      %183 = vmatpush1.msra.mxu0 0.0
      %184 = vmatprep.subr.mxu0 0.0
      %185 = vmatpush1.msra.mxu0 0.0
      %186 = vmatprep.mubr.f32.mxu0 0.0
      %187 = vmatmul.mubr.f32.gmra.mrb[0].mxu0 %v117
      %v188 = vpop.f32.mrb[0].mxu0
      %v189 = vadd.f32 %v108, %v188
      %v190 = vpop.f32.mrb[0].mxu0
      %v191 = vadd.f32 %v112, %v190
      %192 = vmatprep.mubr.f32.mxu0 0.0
      %193 = vmatmul.mubr.f32.gmra.mrb[0].mxu0 %v120
      %v194 = vpop.f32.mrb[0].mxu0
      %v195 = vadd.f32 %v108, %v194
      %v196 = vpop.f32.mrb[0].mxu0
      %v197 = vadd.f32 %v112, %v196
      %198 = vdwg.mxu0
      %v199 = vxor.u32 %v189, 2147483648
      %v200 = vxor.u32 %v191, 2147483648
      %v201 = vxor.u32 %v195, 2147483648
      %v202 = vxor.u32 %v197, 2147483648
      %v203 = vmul.f32 %v199, 1.442695
      %v204 = vpow.pop %v203
      %v205 = vmul.f32 %v200, 1.442695
      %v206 = vpow.pop %v205
      %v207 = vmul.f32 %v201, 1.442695
      %v208 = vpow.pop %v207
      %v209 = vmul.f32 %v202, 1.442695
      %v210 = vpow.pop %v209
      %v211 = vadd.f32 %v204, 1.0
      %v212 = vadd.f32 %v206, 1.0
      %v213 = vadd.f32 %v208, 1.0
      %v214 = vadd.f32 %v210, 1.0
      %v215 = vrcp.pop %v211
      %v216 = vmul.f32 1.0, %v215
      %v217 = vrcp.pop %v212
      %v218 = vmul.f32 1.0, %v217
      %v219 = vrcp.pop %v213
      %v220 = vmul.f32 1.0, %v219
      %v221 = vrcp.pop %v214
      %v222 = vmul.f32 1.0, %v221
      %v223 = vmul.f32 %v189, %v216
      %v224 = vmul.f32 %v191, %v218
      %v225 = vmul.f32 %v195, %v220
      %v226 = vmul.f32 %v197, %v222
      %227 = vst [vmem:[#allocation2] sm:$0xff] %v223
      %228 = vst [vmem:[#allocation2 + $0x8] sm:$0xff] %v224
      %229 = vst [vmem:[#allocation2 + $0x10] sm:$0xff] %v225
      %230 = vst [vmem:[#allocation2 + $0x18] sm:$0xff] %v226
    $region37: #{tpu_custom_call.1} parent=1 // pred_fallthru
      _
    %v231 = vld [vmem:[#allocation2] sm:$0xff]
    %v232 = vld [vmem:[#allocation2 + $0x8] sm:$0xff]
    %v233 = vld [vmem:[#allocation2 + $0x10] sm:$0xff]
    %v234 = vld [vmem:[#allocation2 + $0x18] sm:$0xff]
    %v235 = vld [vmem:[#allocation8] sm:$0xff]
    %v236 = vld [vmem:[#allocation8 + $0x8] sm:$0xff]
    %v237 = vld [vmem:[#allocation8 + $0x10] sm:$0xff]
    %v238 = vld [vmem:[#allocation8 + $0x18] sm:$0xff]
    %v239 = vld [vmem:[#allocation8 + $0x20] sm:$0xff]
    %v240 = vld [vmem:[#allocation8 + $0x28] sm:$0xff]
    %v241 = vld [vmem:[#allocation8 + $0x30] sm:$0xff]
    %v242 = vld [vmem:[#allocation8 + $0x38] sm:$0xff]
    %v243 = vld [vmem:[#allocation8 + $0x40] sm:$0xff]
    %v244 = vld [vmem:[#allocation8 + $0x48] sm:$0xff]
    %v245 = vld [vmem:[#allocation8 + $0x50] sm:$0xff]
    %v246 = vld [vmem:[#allocation8 + $0x58] sm:$0xff]
    %v247 = vld [vmem:[#allocation8 + $0x60] sm:$0xff]
    %v248 = vld [vmem:[#allocation8 + $0x68] sm:$0xff]
    %v249 = vld [vmem:[#allocation8 + $0x70] sm:$0xff]
    %v250 = vld [vmem:[#allocation8 + $0x78] sm:$0xff]
    %v251 = vld [vmem:[#allocation8 + $0x80] sm:$0xff]
    %v252 = vld [vmem:[#allocation8 + $0x88] sm:$0xff]
    %v253 = vld [vmem:[#allocation8 + $0x90] sm:$0xff]
    %v254 = vld [vmem:[#allocation8 + $0x98] sm:$0xff]
    %v255 = vld [vmem:[#allocation8 + $0xa0] sm:$0xff]
    %v256 = vld [vmem:[#allocation8 + $0xa8] sm:$0xff]
    %v257 = vld [vmem:[#allocation8 + $0xb0] sm:$0xff]
    %v258 = vld [vmem:[#allocation8 + $0xb8] sm:$0xff]
    %v259 = vld [vmem:[#allocation8 + $0xc0] sm:$0xff]
    %v260 = vld [vmem:[#allocation8 + $0xc8] sm:$0xff]
    %v261 = vld [vmem:[#allocation8 + $0xd0] sm:$0xff]
    %v262 = vld [vmem:[#allocation8 + $0xd8] sm:$0xff]
    %v263 = vld [vmem:[#allocation8 + $0xe0] sm:$0xff]
    %v264 = vld [vmem:[#allocation8 + $0xe8] sm:$0xff]
    %v265 = vld [vmem:[#allocation8 + $0xf0] sm:$0xff]
    %v266 = vld [vmem:[#allocation8 + $0xf8] sm:$0xff]
    %v267 = vld [vmem:[#allocation8 + $0x100] sm:$0xff]
    %v268 = vld [vmem:[#allocation8 + $0x108] sm:$0xff]
    %v269 = vld [vmem:[#allocation8 + $0x110] sm:$0xff]
    %v270 = vld [vmem:[#allocation8 + $0x118] sm:$0xff]
    %v271 = vld [vmem:[#allocation8 + $0x120] sm:$0xff]
    %v272 = vld [vmem:[#allocation8 + $0x128] sm:$0xff]
    %v273 = vld [vmem:[#allocation8 + $0x130] sm:$0xff]
    %v274 = vld [vmem:[#allocation8 + $0x138] sm:$0xff]
    %v275 = vld [vmem:[#allocation8 + $0x140] sm:$0xff]
    %v276 = vld [vmem:[#allocation8 + $0x148] sm:$0xff]
    %v277 = vld [vmem:[#allocation8 + $0x150] sm:$0xff]
    %v278 = vld [vmem:[#allocation8 + $0x158] sm:$0xff]
    %v279 = vld [vmem:[#allocation8 + $0x160] sm:$0xff]
    %v280 = vld [vmem:[#allocation8 + $0x168] sm:$0xff]
    %v281 = vld [vmem:[#allocation8 + $0x170] sm:$0xff]
    %v282 = vld [vmem:[#allocation8 + $0x178] sm:$0xff]
    %v283 = vld [vmem:[#allocation8 + $0x180] sm:$0xff]
    %v284 = vld [vmem:[#allocation8 + $0x188] sm:$0xff]
    %v285 = vld [vmem:[#allocation8 + $0x190] sm:$0xff]
    %v286 = vld [vmem:[#allocation8 + $0x198] sm:$0xff]
    %v287 = vld [vmem:[#allocation8 + $0x1a0] sm:$0xff]
    %v288 = vld [vmem:[#allocation8 + $0x1a8] sm:$0xff]
    %v289 = vld [vmem:[#allocation8 + $0x1b0] sm:$0xff]
    %v290 = vld [vmem:[#allocation8 + $0x1b8] sm:$0xff]
    %v291 = vld [vmem:[#allocation8 + $0x1c0] sm:$0xff]
    %v292 = vld [vmem:[#allocation8 + $0x1c8] sm:$0xff]
    %v293 = vld [vmem:[#allocation8 + $0x1d0] sm:$0xff]
    %v294 = vld [vmem:[#allocation8 + $0x1d8] sm:$0xff]
    %v295 = vld [vmem:[#allocation8 + $0x1e0] sm:$0xff]
    %v296 = vld [vmem:[#allocation8 + $0x1e8] sm:$0xff]
    %v297 = vld [vmem:[#allocation8 + $0x1f0] sm:$0xff]
    %v298 = vld [vmem:[#allocation8 + $0x1f8] sm:$0xff]
    %v299 = vld [vmem:[%s84] sm:$0x3]
    %v301 = vlaneseq
    %v302 = vshrl.u32 %v301, 7
    %v303 = vsub.s32 0, %v302
    %v304 = vrot.slane %v299, %v303
    %v305 = vlaneseq
    %v306 = vshrl.u32 %v305, 7
    %v307 = vsub.s32 1, %v306
    %v308 = vrot.slane %v299, %v307
    %311 = vmatprep.subr.mxu0 %v236
    %312 = vmatpush1.msra.mxu0 %v235
    %313 = vmatprep.subr.mxu0 %v238
    %314 = vmatpush1.msra.mxu0 %v237
    %315 = vmatprep.subr.mxu0 %v240
    %316 = vmatpush1.msra.mxu0 %v239
    %317 = vmatprep.subr.mxu0 %v242
    %318 = vmatpush1.msra.mxu0 %v241
    %319 = vmatprep.subr.mxu0 %v244
    %320 = vmatpush1.msra.mxu0 %v243
    %321 = vmatprep.subr.mxu0 %v246
    %322 = vmatpush1.msra.mxu0 %v245
    %323 = vmatprep.subr.mxu0 %v248
    %324 = vmatpush1.msra.mxu0 %v247
    %325 = vmatprep.subr.mxu0 %v250
    %326 = vmatpush1.msra.mxu0 %v249
    %327 = vmatprep.subr.mxu0 %v252
    %328 = vmatpush1.msra.mxu0 %v251
    %329 = vmatprep.subr.mxu0 %v254
    %330 = vmatpush1.msra.mxu0 %v253
    %331 = vmatprep.subr.mxu0 %v256
    %332 = vmatpush1.msra.mxu0 %v255
    %333 = vmatprep.subr.mxu0 %v258
    %334 = vmatpush1.msra.mxu0 %v257
    %335 = vmatprep.subr.mxu0 %v260
    %336 = vmatpush1.msra.mxu0 %v259
    %337 = vmatprep.subr.mxu0 %v262
    %338 = vmatpush1.msra.mxu0 %v261
    %339 = vmatprep.subr.mxu0 %v264
    %340 = vmatpush1.msra.mxu0 %v263
    %341 = vmatprep.subr.mxu0 %v266
    %342 = vmatpush1.msra.mxu0 %v265
    %343 = vmatprep.subr.mxu0 %v268
    %344 = vmatpush1.msra.mxu0 %v267
    %345 = vmatprep.subr.mxu0 %v270
    %346 = vmatpush1.msra.mxu0 %v269
    %347 = vmatprep.subr.mxu0 %v272
    %348 = vmatpush1.msra.mxu0 %v271
    %349 = vmatprep.subr.mxu0 %v274
    %350 = vmatpush1.msra.mxu0 %v273
    %351 = vmatprep.subr.mxu0 %v276
    %352 = vmatpush1.msra.mxu0 %v275
    %353 = vmatprep.subr.mxu0 %v278
    %354 = vmatpush1.msra.mxu0 %v277
    %355 = vmatprep.subr.mxu0 %v280
    %356 = vmatpush1.msra.mxu0 %v279
    %357 = vmatprep.subr.mxu0 %v282
    %358 = vmatpush1.msra.mxu0 %v281
    %359 = vmatprep.subr.mxu0 %v284
    %360 = vmatpush1.msra.mxu0 %v283
    %361 = vmatprep.subr.mxu0 %v286
    %362 = vmatpush1.msra.mxu0 %v285
    %363 = vmatprep.subr.mxu0 %v288
    %364 = vmatpush1.msra.mxu0 %v287
    %365 = vmatprep.subr.mxu0 %v290
    %366 = vmatpush1.msra.mxu0 %v289
    %367 = vmatprep.subr.mxu0 %v292
    %368 = vmatpush1.msra.mxu0 %v291
    %369 = vmatprep.subr.mxu0 %v294
    %370 = vmatpush1.msra.mxu0 %v293
    %371 = vmatprep.subr.mxu0 %v296
    %372 = vmatpush1.msra.mxu0 %v295
    %373 = vmatprep.subr.mxu0 %v298
    %374 = vmatpush1.msra.mxu0 %v297
    %375 = vmatprep.mubr.f32.mxu0 %v232
    %376 = vmatmul.mubr.f32.gmra.mrb[0].mxu0 %v231
    %v377 = vpop.f32.mrb[0].mxu0
    %v378 = vadd.f32 %v304, %v377
    %v379 = vpop.f32.mrb[0].mxu0
    %v380 = vadd.f32 %v308, %v379
    %381 = vmatprep.mubr.f32.mxu0 %v234
    %382 = vmatmul.mubr.f32.gmra.mrb[0].mxu0 %v233
    %v383 = vpop.f32.mrb[0].mxu0
    %v384 = vadd.f32 %v304, %v383
    %v385 = vpop.f32.mrb[0].mxu0
    %v386 = vadd.f32 %v308, %v385
    %387 = vdwg.mxu0
    %388 = vst [vmem:[#allocation9] sm:$0xff] %v378
    %389 = vst [vmem:[#allocation9 + $0x8] sm:$0xff] %v380
    %390 = vst [vmem:[#allocation9 + $0x10] sm:$0xff] %v384
    %391 = vst [vmem:[#allocation9 + $0x18] sm:$0xff] %v386
    // Predicated region
    $region38: #{tpu_custom_call.1} parent=1 // pred_check
      _
    $region39: #{tpu_custom_call.1} parent=1 // pred_check_branch
      %393 = sbr.rel (0) target = $region41
    $region40: #{tpu_custom_call.1} parent=1 // pred_region
      %s394 = sadd.s32 0, 0
      %s395 = smul.u32 2, %s394
      %s397 = ssub.s32 512, 512
      %398 = vsyncadd [#allocation5], %s397
      %s399 = smul.addr %s395, 128
      %s400 = scalar_lea.hbm %s5, %s399
      %s401 = sshll.u32 [#allocation9], 4
      %s402 = int_to_ptr.vmem [resolvable:$true] %s401
      %407 = dma.vmem_to_hbm [thread:$0]  %s402, 512, %s400, [#allocation5], 256, 256, 16
    $region41: #{tpu_custom_call.1} parent=1 // pred_fallthru
      _
    // Predicated region
    $region42: #{tpu_custom_call.1} parent=1 // pred_check
      _
    $region43: #{tpu_custom_call.1} parent=1 // pred_check_branch
      %409 = sbr.rel (0) target = $region45
    $region44: #{tpu_custom_call.1} parent=1 // pred_region
      %410 = dma.done [#allocation5], 512
    $region45: #{tpu_custom_call.1} parent=1 // pred_fallthru
      _
    %411 = vsyncpa [#allocation4], 1
    %412 = vsyncpa [#allocation7], 1
    %413 = vsyncpa [#allocation5], 1

// kernel: tpu_custom_call.1
$region0: #{tpu_custom_call.1}
  #allocation0 [shape = 'u32[]', space=smem, size = 0x4, offset = 0x4, fixed_abs, tag = 'smem constant byte address 0x4 - core index']
  #allocation1 [shape = 'u32[144,128]{1,0:T(1,128)}', space=vmem, size = 0x12000, scoped, tag = 'internal scratch']
  #allocation2 [shape = 'f32[16,256]{1,0:T(8,128)}', space=vmem, size = 0x4000, scoped, tag = 'scratch operand']
  %s0 = inlined_call_operand.hbm [shape: f32[16,32], index: 0, kind: input, shape index: {}]
  %s1 = inlined_call_operand.hbm [shape: f32[32,256], index: 1, kind: input, shape index: {}]
  %s2 = inlined_call_operand.vmem [shape: f32[1,256], index: 2, kind: input, shape index: {}]
  %s3 = inlined_call_operand.hbm [shape: f32[256,256], index: 3, kind: input, shape index: {}]
  %s4 = inlined_call_operand.vmem [shape: f32[1,256], index: 4, kind: input, shape index: {}]
  %s5 = inlined_call_operand.hbm [shape: f32[16,256], index: 5, kind: output, shape index: {}]
  %s6 = sld [smem:[#allocation0]]
  $region46: #{tpu_custom_call.1} parent=0
    _
  %s8 = ssub.s32 1, %s6
  %s9 = scalar_select 0, %s8, %s6
  $region1: #{tpu_custom_call.1} parent=0
    #allocation3 [shape = 'u8[8192]{0}', space=vmem, size = 0x2000, scoped, tag = 'input window, operand 0, single buffered']
    #allocation4 [shape = 's32[1]{0}', space=sflag, size = 0x4, scoped, tag = 'scoped memory for tpu_custom_call.1']
    #allocation5 [shape = 's32[1]{0}', space=sflag, size = 0x4, scoped, tag = 'scoped memory for tpu_custom_call.1']
    #allocation6 [shape = 'u8[32768]{0}', space=vmem, size = 0x8000, scoped, tag = 'input window, operand 1, single buffered']
    #allocation7 [shape = 's32[1]{0}', space=sflag, size = 0x4, scoped, tag = 'scoped memory for tpu_custom_call.1']
    #allocation8 [shape = 'u8[262144]{0}', space=vmem, size = 0x40000, scoped, tag = 'input window, operand 3, single buffered']
    #allocation9 [shape = 'u8[16384]{0}', space=vmem, size = 0x4000, scoped, tag = 'output window, operand 0, single buffered']
    %10 = vsyncpa [#allocation4], 0
    %11 = vsyncpa [#allocation7], 0
    %12 = vsyncpa [#allocation5], 0
    // Predicated region
    $region2: #{tpu_custom_call.1} parent=1 // pred_check
      _
    $region3: #{tpu_custom_call.1} parent=1 // pred_check_branch
      %14 = sbr.rel (0) target = $region5
    $region4: #{tpu_custom_call.1} parent=1 // pred_region
      %s16 = ssub.s32 256, 256
      %17 = vsyncadd [#allocation4], %s16
      %s18 = sshll.u32 [#allocation3], 4
      %s19 = int_to_ptr.vmem [resolvable:$true] %s18
      %24 = dma.hbm_to_vmem [thread:$0]  %s0, 256, %s19, [#allocation4], 128, 128, 8
    $region5: #{tpu_custom_call.1} parent=1 // pred_fallthru
      _
    // Predicated region
    $region6: #{tpu_custom_call.1} parent=1 // pred_check
      _
    $region7: #{tpu_custom_call.1} parent=1 // pred_check_branch
      %26 = sbr.rel (0) target = $region9
    $region8: #{tpu_custom_call.1} parent=1 // pred_region
      %s28 = ssub.s32 1024, 1024
      %29 = vsyncadd [#allocation7], %s28
      %s30 = sshll.u32 [#allocation6], 4
      %s31 = int_to_ptr.vmem [resolvable:$true] %s30
      %36 = dma.hbm_to_vmem [thread:$0]  %s1, 1024, %s31, [#allocation7], 256, 256, 16
    $region9: #{tpu_custom_call.1} parent=1 // pred_fallthru
      _
    // Predicated region
    $region10: #{tpu_custom_call.1} parent=1 // pred_check
      _
    $region11: #{tpu_custom_call.1} parent=1 // pred_check_branch
      %38 = sbr.rel (0) target = $region13
    $region12: #{tpu_custom_call.1} parent=1 // pred_region
      _
    $region13: #{tpu_custom_call.1} parent=1 // pred_fallthru
      _
    // Predicated region
    $region14: #{tpu_custom_call.1} parent=1 // pred_check
      _
    $region15: #{tpu_custom_call.1} parent=1 // pred_check_branch
      %40 = sbr.rel (0) target = $region17
    $region16: #{tpu_custom_call.1} parent=1 // pred_region
      %s41 = sadd.s32 0, 0
      %s42 = smul.u32 2, %s41
      %s44 = ssub.s32 8192, 8192
      %45 = vsyncadd [#allocation7], %s44
      %s46 = smul.addr %s42, 128
      %s47 = scalar_lea.hbm %s3, %s46
      %s48 = sshll.u32 [#allocation8], 4
      %s49 = int_to_ptr.vmem [resolvable:$true] %s48
      %54 = dma.hbm_to_vmem [thread:$0]  %s47, 8192, %s49, [#allocation7], 256, 256, 16
    $region17: #{tpu_custom_call.1} parent=1 // pred_fallthru
      _
    // Predicated region
    $region18: #{tpu_custom_call.1} parent=1 // pred_check
      _
    $region19: #{tpu_custom_call.1} parent=1 // pred_check_branch
      %56 = sbr.rel (0) target = $region21
    $region20: #{tpu_custom_call.1} parent=1 // pred_region
      %s57 = sadd.s32 0, 0
      %s58 = smul.u32 2, %s57
      %p59 = scmp.lt.s32.totalorder %s58, 1
      %s60 = scalar_select %p59, %s58, 1
      %s61 = scalar_lea.vmem %s4, %s60
      %s62 = sadd.s32 0, 0
      %s63 = smul.u32 2, %s62
    $region21: #{tpu_custom_call.1} parent=1 // pred_fallthru
      _
    // Predicated region
    $region22: #{tpu_custom_call.1} parent=1 // pred_check
      _
    $region23: #{tpu_custom_call.1} parent=1 // pred_check_branch
      %65 = sbr.rel (0) target = $region25
    $region24: #{tpu_custom_call.1} parent=1 // pred_region
      %66 = dma.done [#allocation4], 256
    $region25: #{tpu_custom_call.1} parent=1 // pred_fallthru
      _
    // Predicated region
    $region26: #{tpu_custom_call.1} parent=1 // pred_check
      _
    $region27: #{tpu_custom_call.1} parent=1 // pred_check_branch
      %68 = sbr.rel (0) target = $region29
    $region28: #{tpu_custom_call.1} parent=1 // pred_region
      %69 = dma.done [#allocation7], 1024
    $region29: #{tpu_custom_call.1} parent=1 // pred_fallthru
      _
    // Predicated region
    $region30: #{tpu_custom_call.1} parent=1 // pred_check
      _
    $region31: #{tpu_custom_call.1} parent=1 // pred_check_branch
      %71 = sbr.rel (0) target = $region33
    $region32: #{tpu_custom_call.1} parent=1 // pred_region
      %72 = dma.done [#allocation7], 8192
    $region33: #{tpu_custom_call.1} parent=1 // pred_fallthru
      _
    %s73 = sadd.s32 0, 0
    %s74 = smul.u32 2, %s73
    %p75 = scmp.lt.s32.totalorder %s74, 1
    %s76 = scalar_select %p75, %s74, 1
    %s77 = scalar_lea.vmem %s4, %s76
    %s78 = sadd.s32 0, 0
    %s79 = smul.u32 2, %s78
    %s80 = sadd.s32 0, 0
    %s81 = smul.u32 2, %s80
    %p82 = scmp.lt.s32.totalorder %s81, 1
    %s83 = scalar_select %p82, %s81, 1
    %s84 = scalar_lea.vmem %s4, %s83
    %s85 = sadd.s32 0, 0
    %s86 = smul.u32 2, %s85
    %s87 = sadd.s32 0, 0
    %s88 = smul.u32 2, %s87
    %p89 = scmp.eq.s32.totalorder 0, 0
    // Predicated region
    $region34: #{tpu_custom_call.1} parent=1 // pred_check
      %p90 = pneg %p89
    $region35: #{tpu_custom_call.1} parent=1 // pred_check_branch
      %92 = sbr.rel (%p90) target = $region37
    $region36: #{tpu_custom_call.1} parent=1 // pred_region
      %v93 = vld [vmem:[#allocation3] sm:$0xff]
      %v94 = vld [vmem:[#allocation3 + $0x8] sm:$0xff]
      %v95 = vld [vmem:[#allocation6] sm:$0xff]
      %v96 = vld [vmem:[#allocation6 + $0x8] sm:$0xff]
      %v97 = vld [vmem:[#allocation6 + $0x10] sm:$0xff]
      %v98 = vld [vmem:[#allocation6 + $0x18] sm:$0xff]
      %v99 = vld [vmem:[#allocation6 + $0x20] sm:$0xff]
      %v100 = vld [vmem:[#allocation6 + $0x28] sm:$0xff]
      %v101 = vld [vmem:[#allocation6 + $0x30] sm:$0xff]
      %v102 = vld [vmem:[#allocation6 + $0x38] sm:$0xff]
      %v103 = vld [vmem:[%s2] sm:$0x3]
      %v105 = vlaneseq
      %v106 = vshrl.u32 %v105, 7
      %v107 = vsub.s32 0, %v106
      %v108 = vrot.slane %v103, %v107
      %v109 = vlaneseq
      %v110 = vshrl.u32 %v109, 7
      %v111 = vsub.s32 1, %v110
      %v112 = vrot.slane %v103, %v111
      %vm115 = vcmask 261120
      %v117 = vsel %vm115, %v93, 0
      %v120 = vsel %vm115, %v94, 0
      %122 = vmatprep.subr.mxu0 %v96
      %123 = vmatpush1.msra.mxu0 %v95
      %124 = vmatprep.subr.mxu0 %v98
      %125 = vmatpush1.msra.mxu0 %v97
      %126 = vmatprep.subr.mxu0 %v100
      %127 = vmatpush1.msra.mxu0 %v99
      %128 = vmatprep.subr.mxu0 %v102
      %129 = vmatpush1.msra.mxu0 %v101
      %130 = vmatprep.subr.mxu0 0.0
      %131 = vmatpush1.msra.mxu0 0.0
      %132 = vmatprep.subr.mxu0 0.0
      %133 = vmatpush1.msra.mxu0 0.0
      %134 = vmatprep.subr.mxu0 0.0
      %135 = vmatpush1.msra.mxu0 0.0
      %136 = vmatprep.subr.mxu0 0.0
      %137 = vmatpush1.msra.mxu0 0.0
      %138 = vmatprep.subr.mxu0 0.0
      %139 = vmatpush1.msra.mxu0 0.0
      %140 = vmatprep.subr.mxu0 0.0
      %141 = vmatpush1.msra.mxu0 0.0
      %142 = vmatprep.subr.mxu0 0.0
      %143 = vmatpush1.msra.mxu0 0.0
      %144 = vmatprep.subr.mxu0 0.0
      %145 = vmatpush1.msra.mxu0 0.0
      %146 = vmatprep.subr.mxu0 0.0
      %147 = vmatpush1.msra.mxu0 0.0
      %148 = vmatprep.subr.mxu0 0.0
      %149 = vmatpush1.msra.mxu0 0.0
      %150 = vmatprep.subr.mxu0 0.0
      %151 = vmatpush1.msra.mxu0 0.0
      %152 = vmatprep.subr.mxu0 0.0
      %153 = vmatpush1.msra.mxu0 0.0
      %154 = vmatprep.subr.mxu0 0.0
      %155 = vmatpush1.msra.mxu0 0.0
      %156 = vmatprep.subr.mxu0 0.0
      %157 = vmatpush1.msra.mxu0 0.0
      %158 = vmatprep.subr.mxu0 0.0
      %159 = vmatpush1.msra.mxu0 0.0
      %160 = vmatprep.subr.mxu0 0.0
      %161 = vmatpush1.msra.mxu0 0.0
      %162 = vmatprep.subr.mxu0 0.0
      %163 = vmatpush1.msra.mxu0 0.0
      %164 = vmatprep.subr.mxu0 0.0
      %165 = vmatpush1.msra.mxu0 0.0
      %166 = vmatprep.subr.mxu0 0.0
      %167 = vmatpush1.msra.mxu0 0.0
      %168 = vmatprep.subr.mxu0 0.0
      %169 = vmatpush1.msra.mxu0 0.0
      %170 = vmatprep.subr.mxu0 0.0
      %171 = vmatpush1.msra.mxu0 0.0
      %172 = vmatprep.subr.mxu0 0.0
      %173 = vmatpush1.msra.mxu0 0.0
      %174 = vmatprep.subr.mxu0 0.0
      %175 = vmatpush1.msra.mxu0 0.0
      %176 = vmatprep.subr.mxu0 0.0
      %177 = vmatpush1.msra.mxu0 0.0
      %178 = vmatprep.subr.mxu0 0.0
      %179 = vmatpush1.msra.mxu0 0.0
      %180 = vmatprep.subr.mxu0 0.0
      %181 = vmatpush1.msra.mxu0 0.0
      %182 = vmatprep.subr.mxu0 0.0
      %183 = vmatpush1.msra.mxu0 0.0
      %184 = vmatprep.subr.mxu0 0.0
      %185 = vmatpush1.msra.mxu0 0.0
      %186 = vmatprep.mubr.f32.mxu0 0.0
      %187 = vmatmul.mubr.f32.gmra.mrb[0].mxu0 %v117
      %v188 = vpop.f32.mrb[0].mxu0
      %v189 = vadd.f32 %v108, %v188
      %v190 = vpop.f32.mrb[0].mxu0
      %v191 = vadd.f32 %v112, %v190
      %192 = vmatprep.mubr.f32.mxu0 0.0
      %193 = vmatmul.mubr.f32.gmra.mrb[0].mxu0 %v120
      %v194 = vpop.f32.mrb[0].mxu0
      %v195 = vadd.f32 %v108, %v194
      %v196 = vpop.f32.mrb[0].mxu0
      %v197 = vadd.f32 %v112, %v196
      %198 = vdwg.mxu0
      %v199 = vxor.u32 %v189, 2147483648
      %v200 = vxor.u32 %v191, 2147483648
      %v201 = vxor.u32 %v195, 2147483648
      %v202 = vxor.u32 %v197, 2147483648
      %v203 = vmul.f32 %v199, 1.442695
      %v204 = vpow.pop %v203
      %v205 = vmul.f32 %v200, 1.442695
      %v206 = vpow.pop %v205
      %v207 = vmul.f32 %v201, 1.442695
      %v208 = vpow.pop %v207
      %v209 = vmul.f32 %v202, 1.442695
      %v210 = vpow.pop %v209
      %v211 = vadd.f32 %v204, 1.0
      %v212 = vadd.f32 %v206, 1.0
      %v213 = vadd.f32 %v208, 1.0
      %v214 = vadd.f32 %v210, 1.0
      %v215 = vrcp.pop %v211
      %v216 = vmul.f32 1.0, %v215
      %v217 = vrcp.pop %v212
      %v218 = vmul.f32 1.0, %v217
      %v219 = vrcp.pop %v213
      %v220 = vmul.f32 1.0, %v219
      %v221 = vrcp.pop %v214
      %v222 = vmul.f32 1.0, %v221
      %v223 = vmul.f32 %v189, %v216
      %v224 = vmul.f32 %v191, %v218
      %v225 = vmul.f32 %v195, %v220
      %v226 = vmul.f32 %v197, %v222
      %227 = vst [vmem:[#allocation2] sm:$0xff] %v223
      %228 = vst [vmem:[#allocation2 + $0x8] sm:$0xff] %v224
      %229 = vst [vmem:[#allocation2 + $0x10] sm:$0xff] %v225
      %230 = vst [vmem:[#allocation2 + $0x18] sm:$0xff] %v226
    $region37: #{tpu_custom_call.1} parent=1 // pred_fallthru
      _
    %v231 = vld [vmem:[#allocation2] sm:$0xff]
    %v232 = vld [vmem:[#allocation2 + $0x8] sm:$0xff]
    %v233 = vld [vmem:[#allocation2 + $0x10] sm:$0xff]
    %v234 = vld [vmem:[#allocation2 + $0x18] sm:$0xff]
    %v235 = vld [vmem:[#allocation8] sm:$0xff]
    %v236 = vld [vmem:[#allocation8 + $0x8] sm:$0xff]
    %v237 = vld [vmem:[#allocation8 + $0x10] sm:$0xff]
    %v238 = vld [vmem:[#allocation8 + $0x18] sm:$0xff]
    %v239 = vld [vmem:[#allocation8 + $0x20] sm:$0xff]
    %v240 = vld [vmem:[#allocation8 + $0x28] sm:$0xff]
    %v241 = vld [vmem:[#allocation8 + $0x30] sm:$0xff]
    %v242 = vld [vmem:[#allocation8 + $0x38] sm:$0xff]
    %v243 = vld [vmem:[#allocation8 + $0x40] sm:$0xff]
    %v244 = vld [vmem:[#allocation8 + $0x48] sm:$0xff]
    %v245 = vld [vmem:[#allocation8 + $0x50] sm:$0xff]
    %v246 = vld [vmem:[#allocation8 + $0x58] sm:$0xff]
    %v247 = vld [vmem:[#allocation8 + $0x60] sm:$0xff]
    %v248 = vld [vmem:[#allocation8 + $0x68] sm:$0xff]
    %v249 = vld [vmem:[#allocation8 + $0x70] sm:$0xff]
    %v250 = vld [vmem:[#allocation8 + $0x78] sm:$0xff]
    %v251 = vld [vmem:[#allocation8 + $0x80] sm:$0xff]
    %v252 = vld [vmem:[#allocation8 + $0x88] sm:$0xff]
    %v253 = vld [vmem:[#allocation8 + $0x90] sm:$0xff]
    %v254 = vld [vmem:[#allocation8 + $0x98] sm:$0xff]
    %v255 = vld [vmem:[#allocation8 + $0xa0] sm:$0xff]
    %v256 = vld [vmem:[#allocation8 + $0xa8] sm:$0xff]
    %v257 = vld [vmem:[#allocation8 + $0xb0] sm:$0xff]
    %v258 = vld [vmem:[#allocation8 + $0xb8] sm:$0xff]
    %v259 = vld [vmem:[#allocation8 + $0xc0] sm:$0xff]
    %v260 = vld [vmem:[#allocation8 + $0xc8] sm:$0xff]
    %v261 = vld [vmem:[#allocation8 + $0xd0] sm:$0xff]
    %v262 = vld [vmem:[#allocation8 + $0xd8] sm:$0xff]
    %v263 = vld [vmem:[#allocation8 + $0xe0] sm:$0xff]
    %v264 = vld [vmem:[#allocation8 + $0xe8] sm:$0xff]
    %v265 = vld [vmem:[#allocation8 + $0xf0] sm:$0xff]
    %v266 = vld [vmem:[#allocation8 + $0xf8] sm:$0xff]
    %v267 = vld [vmem:[#allocation8 + $0x100] sm:$0xff]
    %v268 = vld [vmem:[#allocation8 + $0x108] sm:$0xff]
    %v269 = vld [vmem:[#allocation8 + $0x110] sm:$0xff]
    %v270 = vld [vmem:[#allocation8 + $0x118] sm:$0xff]
    %v271 = vld [vmem:[#allocation8 + $0x120] sm:$0xff]
    %v272 = vld [vmem:[#allocation8 + $0x128] sm:$0xff]
    %v273 = vld [vmem:[#allocation8 + $0x130] sm:$0xff]
    %v274 = vld [vmem:[#allocation8 + $0x138] sm:$0xff]
    %v275 = vld [vmem:[#allocation8 + $0x140] sm:$0xff]
    %v276 = vld [vmem:[#allocation8 + $0x148] sm:$0xff]
    %v277 = vld [vmem:[#allocation8 + $0x150] sm:$0xff]
    %v278 = vld [vmem:[#allocation8 + $0x158] sm:$0xff]
    %v279 = vld [vmem:[#allocation8 + $0x160] sm:$0xff]
    %v280 = vld [vmem:[#allocation8 + $0x168] sm:$0xff]
    %v281 = vld [vmem:[#allocation8 + $0x170] sm:$0xff]
    %v282 = vld [vmem:[#allocation8 + $0x178] sm:$0xff]
    %v283 = vld [vmem:[#allocation8 + $0x180] sm:$0xff]
    %v284 = vld [vmem:[#allocation8 + $0x188] sm:$0xff]
    %v285 = vld [vmem:[#allocation8 + $0x190] sm:$0xff]
    %v286 = vld [vmem:[#allocation8 + $0x198] sm:$0xff]
    %v287 = vld [vmem:[#allocation8 + $0x1a0] sm:$0xff]
    %v288 = vld [vmem:[#allocation8 + $0x1a8] sm:$0xff]
    %v289 = vld [vmem:[#allocation8 + $0x1b0] sm:$0xff]
    %v290 = vld [vmem:[#allocation8 + $0x1b8] sm:$0xff]
    %v291 = vld [vmem:[#allocation8 + $0x1c0] sm:$0xff]
    %v292 = vld [vmem:[#allocation8 + $0x1c8] sm:$0xff]
    %v293 = vld [vmem:[#allocation8 + $0x1d0] sm:$0xff]
    %v294 = vld [vmem:[#allocation8 + $0x1d8] sm:$0xff]
    %v295 = vld [vmem:[#allocation8 + $0x1e0] sm:$0xff]
    %v296 = vld [vmem:[#allocation8 + $0x1e8] sm:$0xff]
    %v297 = vld [vmem:[#allocation8 + $0x1f0] sm:$0xff]
    %v298 = vld [vmem:[#allocation8 + $0x1f8] sm:$0xff]
    %v299 = vld [vmem:[%s84] sm:$0x3]
    %v301 = vlaneseq
    %v302 = vshrl.u32 %v301, 7
    %v303 = vsub.s32 0, %v302
    %v304 = vrot.slane %v299, %v303
    %v305 = vlaneseq
    %v306 = vshrl.u32 %v305, 7
    %v307 = vsub.s32 1, %v306
    %v308 = vrot.slane %v299, %v307
    %311 = vmatprep.subr.mxu0 %v236
    %312 = vmatpush1.msra.mxu0 %v235
    %313 = vmatprep.subr.mxu0 %v238
    %314 = vmatpush1.msra.mxu0 %v237
    %315 = vmatprep.subr.mxu0 %v240
    %316 = vmatpush1.msra.mxu0 %v239
    %317 = vmatprep.subr.mxu0 %v242
    %318 = vmatpush1.msra.mxu0 %v241
    %319 = vmatprep.subr.mxu0 %v244
    %320 = vmatpush1.msra.mxu0 %v243
    %321 = vmatprep.subr.mxu0 %v246
    %322 = vmatpush1.msra.mxu0 %v245
    %323 = vmatprep.subr.mxu0 %v248
    %324 = vmatpush1.msra.mxu0 %v247
    %325 = vmatprep.subr.mxu0 %v250
    %326 = vmatpush1.msra.mxu0 %v249
    %327 = vmatprep.subr.mxu0 %v252
    %328 = vmatpush1.msra.mxu0 %v251
    %329 = vmatprep.subr.mxu0 %v254
    %330 = vmatpush1.msra.mxu0 %v253
    %331 = vmatprep.subr.mxu0 %v256
    %332 = vmatpush1.msra.mxu0 %v255
    %333 = vmatprep.subr.mxu0 %v258
    %334 = vmatpush1.msra.mxu0 %v257
    %335 = vmatprep.subr.mxu0 %v260
    %336 = vmatpush1.msra.mxu0 %v259
    %337 = vmatprep.subr.mxu0 %v262
    %338 = vmatpush1.msra.mxu0 %v261
    %339 = vmatprep.subr.mxu0 %v264
    %340 = vmatpush1.msra.mxu0 %v263
    %341 = vmatprep.subr.mxu0 %v266
    %342 = vmatpush1.msra.mxu0 %v265
    %343 = vmatprep.subr.mxu0 %v268
    %344 = vmatpush1.msra.mxu0 %v267
    %345 = vmatprep.subr.mxu0 %v270
    %346 = vmatpush1.msra.mxu0 %v269
    %347 = vmatprep.subr.mxu0 %v272
    %348 = vmatpush1.msra.mxu0 %v271
    %349 = vmatprep.subr.mxu0 %v274
    %350 = vmatpush1.msra.mxu0 %v273
    %351 = vmatprep.subr.mxu0 %v276
    %352 = vmatpush1.msra.mxu0 %v275
    %353 = vmatprep.subr.mxu0 %v278
    %354 = vmatpush1.msra.mxu0 %v277
    %355 = vmatprep.subr.mxu0 %v280
    %356 = vmatpush1.msra.mxu0 %v279
    %357 = vmatprep.subr.mxu0 %v282
    %358 = vmatpush1.msra.mxu0 %v281
    %359 = vmatprep.subr.mxu0 %v284
    %360 = vmatpush1.msra.mxu0 %v283
    %361 = vmatprep.subr.mxu0 %v286
    %362 = vmatpush1.msra.mxu0 %v285
    %363 = vmatprep.subr.mxu0 %v288
    %364 = vmatpush1.msra.mxu0 %v287
    %365 = vmatprep.subr.mxu0 %v290
    %366 = vmatpush1.msra.mxu0 %v289
    %367 = vmatprep.subr.mxu0 %v292
    %368 = vmatpush1.msra.mxu0 %v291
    %369 = vmatprep.subr.mxu0 %v294
    %370 = vmatpush1.msra.mxu0 %v293
    %371 = vmatprep.subr.mxu0 %v296
    %372 = vmatpush1.msra.mxu0 %v295
    %373 = vmatprep.subr.mxu0 %v298
    %374 = vmatpush1.msra.mxu0 %v297
    %375 = vmatprep.mubr.f32.mxu0 %v232
    %376 = vmatmul.mubr.f32.gmra.mrb[0].mxu0 %v231
    %v377 = vpop.f32.mrb[0].mxu0
    %v378 = vadd.f32 %v304, %v377
    %v379 = vpop.f32.mrb[0].mxu0
    %v380 = vadd.f32 %v308, %v379
    %381 = vmatprep.mubr.f32.mxu0 %v234
    %382 = vmatmul.mubr.f32.gmra.mrb[0].mxu0 %v233
    %v383 = vpop.f32.mrb[0].mxu0
    %v384 = vadd.f32 %v304, %v383
    %v385 = vpop.f32.mrb[0].mxu0
    %v386 = vadd.f32 %v308, %v385
    %387 = vdwg.mxu0
    %388 = vst [vmem:[#allocation9] sm:$0xff] %v378
    %389 = vst [vmem:[#allocation9 + $0x8] sm:$0xff] %v380
    %390 = vst [vmem:[#allocation9 + $0x10] sm:$0xff] %v384
    %391 = vst [vmem:[#allocation9 + $0x18] sm:$0xff] %v386
    // Predicated region
    $region38: #{tpu_custom_call.1} parent=1 // pred_check
      _
    $region39: #{tpu_custom_call.1} parent=1 // pred_check_branch
      %393 = sbr.rel (0) target = $region41
    $region40: #{tpu_custom_call.1} parent=1 // pred_region
      %s394 = sadd.s32 0, 0
      %s395 = smul.u32 2, %s394
      %s397 = ssub.s32 512, 512
      %398 = vsyncadd [#allocation5], %s397
      %s399 = smul.addr %s395, 128
      %s400 = scalar_lea.hbm %s5, %s399
      %s401 = sshll.u32 [#allocation9], 4
      %s402 = int_to_ptr.vmem [resolvable:$true] %s401
      %407 = dma.vmem_to_hbm [thread:$0]  %s402, 512, %s400, [#allocation5], 256, 256, 16
    $region41: #{tpu_custom_call.1} parent=1 // pred_fallthru
      _
    // Predicated region
    $region42: #{tpu_custom_call.1} parent=1 // pred_check
      _
    $region43: #{tpu_custom_call.1} parent=1 // pred_check_branch
      %409 = sbr.rel (0) target = $region45
    $region44: #{tpu_custom_call.1} parent=1 // pred_region
      %410 = dma.done [#allocation5], 512
    $region45: #{tpu_custom_call.1} parent=1 // pred_fallthru
      _
    %411 = vsyncpa [#allocation4], 1
    %412 = vsyncpa [#allocation7], 1
    %413 = vsyncpa [#allocation5], 1

</llo_original>
